<compile_context>
chip_gen: v7x
topology: tpu7x:2x2x1
jax: 0.10.0
libtpu: 0.0.40
codegen_flags: <defaults>
</compile_context>

<pallas_src>
import math

import jax
import jax.numpy as jnp
from jax.experimental import pallas as pl
from jax.experimental.pallas import tpu as pltpu


# ----------------------------------------------------------------------------- kernel


def vae_fwd_kernel(
    x_ref, eps_ref,
    w1_ref, b1_ref,
    wenc_ref, benc_ref,
    w3_ref, b3_ref,
    w4_ref, b4_ref,
    recon_ref, mulv_ref,
):
    """One batch tile of the VAE forward. mulv_ref holds [mu | logvar] (lane-padded)."""
    f32 = jnp.float32
    bf16 = jnp.bfloat16
    lp = eps_ref.shape[-1]  # padded latent width (multiple of 128)

    def mxu(a_bf16, w_ref):
        # bf16 operands on the MXU, f32 accumulation.
        return jnp.dot(a_bf16, w_ref[...], preferred_element_type=f32)

    # encode: h1 = relu(x @ W1 + b1)      (x already bf16 from the wrapper)
    h1 = jnp.maximum(mxu(x_ref[...], w1_ref) + b1_ref[...], 0.0)

    # fused latent projection: [mu | logvar] = h1 @ [W21 | W22] + [b21 | b22]
    # mu occupies lanes [0, lp), logvar lanes [lp, 2*lp) -> lane-aligned split.
    mulv = mxu(h1.astype(bf16), wenc_ref) + benc_ref[...]
    mu = mulv[:, :lp]
    logvar = mulv[:, lp:]

    # reparameterize (f32 on VPU/EUP): z = mu + eps * exp(0.5 * logvar)
    # padded latent columns are exactly zero (zero weight cols, zero eps cols).
    z = mu + eps_ref[...] * jnp.exp(0.5 * logvar)

    # decode: tanh(relu(z @ W3 + b3) @ W4 + b4)
    h3 = jnp.maximum(mxu(z.astype(bf16), w3_ref) + b3_ref[...], 0.0)
    recon = jnp.tanh(mxu(h3.astype(bf16), w4_ref) + b4_ref[...])

    recon_ref[...] = recon.astype(recon_ref.dtype)   # bf16, lane-dense
    mulv_ref[...] = mulv.astype(mulv_ref.dtype)      # f32,  lane-dense


# ----------------------------------------------------------------------------- helpers


def _round_up(x, m):
    return ((x + m - 1) // m) * m


def _vmem_capacity_bytes():
    try:
        cap = getattr(pltpu.get_tpu_info(), "vmem_capacity_bytes", None)
        if cap:
            return int(cap)
    except Exception:
        pass
    return 64 << 20  # conservative: v7x per-TensorCore VMEM


def _footprint_bytes(tb, S, H, Lp, Sp):
    """Realistic VMEM footprint for one grid step (no fudge factor)."""
    w = 2 * (S * H + H * 2 * Lp + Lp * H + H * Sp)      # bf16 weights
    b = 4 * (H + 2 * Lp + H + Sp)                        # f32 biases
    # x bf16, eps f32, recon bf16, [mu|logvar] f32 -- all double-buffered.
    io = tb * (2 * S + 4 * Lp + 2 * Sp + 8 * Lp)
    # live f32 intermediates (h1, mulv, z, h3, recon) -- possible spill space.
    interm = 4 * tb * (H + 2 * Lp + Lp + H + Sp)
    # NOTE: constant-index weights may still be double-buffered by the pipeline,
    # hence 2x on (w + b).  They are tiny here, so no Buffered(1) / K-N tiling.
    return 2 * (w + b) + 2 * io + interm


def _pick_batch_tile(batch, requested):
    # bf16 operands pack (16, 128) per vreg: keep the batch tile a multiple of 16.
    tb = 512 if requested is None else max(16, _round_up(requested, 16))
    b16 = _round_up(max(batch, 1), 16)
    tb = min(tb, b16)
    # Keep >= 2 grid steps when the batch allows it so both v7x TensorCores get
    # work under dimension_semantics=("parallel",); no-op on v5e/v6e (1 TC).
    if b16 >= 32 and pl.cdiv(b16, tb) < 2:
        tb = _round_up(pl.cdiv(b16, 2), 16)
    return tb


# ----------------------------------------------------------------------------- wrapper


def vae_forward(x, eps, params, *, batch_tile=None):
    """x: (B, segment_length) f32, eps: (B, latent_dim) f32 -> (recon, mu, logvar)."""
    B, S = x.shape
    L = eps.shape[1]
    H = params["w1"].shape[1]
    Lp = params["w3"].shape[0]        # padded latent width (multiple of 128)
    Sp = params["w4"].shape[1]        # padded recon width  (multiple of 128)

    vmem_cap = _vmem_capacity_bytes()

    tb = _pick_batch_tile(B, batch_tile)
    while tb > 16 and _footprint_bytes(tb, S, H, Lp, Sp) > 0.6 * vmem_cap:
        tb = max(16, ((tb // 2) // 16) * 16)

    b_pad = pl.cdiv(B, tb) * tb
    grid = (b_pad // tb,)

    # Input streams: x as bf16 (halves the widest read); eps stays f32 so the
    # reparameterize step matches the reference noise exactly, zero-padded to Lp.
    x_bf = x.astype(jnp.bfloat16)
    if b_pad != B:
        x_bf = jnp.pad(x_bf, ((0, b_pad - B), (0, 0)))
    eps_p = jnp.zeros((b_pad, Lp), jnp.float32).at[:B, :L].set(eps)

    footprint = _footprint_bytes(tb, S, H, Lp, Sp)
    vmem_limit = int(min(max(2 * footprint, 8 << 20), int(0.75 * vmem_cap)))

    flops = 2 * b_pad * (S * H + H * 2 * Lp + Lp * H + H * Sp)
    transcendentals = int(b_pad * (Lp + Sp))  # exp per latent col + tanh per output col
    w_bytes = 2 * (S * H + H * 2 * Lp + Lp * H + H * Sp) + 4 * (H + 2 * Lp + H + Sp)
    bytes_accessed = int(b_pad * (2 * S + 4 * Lp + 2 * Sp + 8 * Lp) + w_bytes)

    def batch_spec(feat):
        return pl.BlockSpec((tb, feat), lambda i: (i, 0))

    def const_spec(shape):
        return pl.BlockSpec(shape, lambda i: (0, 0))

    recon, mulv = pl.pallas_call(
        vae_fwd_kernel,
        grid=grid,
        in_specs=[
            batch_spec(S),               # x (bf16)
            batch_spec(Lp),              # eps (f32, lane-padded)
            const_spec((S, H)),          # w1     (resident)
            const_spec((1, H)),          # b1
            const_spec((H, 2 * Lp)),     # w_enc = [w21 | 0 | w22 | 0]
            const_spec((1, 2 * Lp)),     # b_enc
            const_spec((Lp, H)),         # w3 (zero-padded rows)
            const_spec((1, H)),          # b3
            const_spec((H, Sp)),         # w4 (zero-padded cols)
            const_spec((1, Sp)),         # b4
        ],
        out_specs=(
            batch_spec(Sp),              # recon (bf16, lane-dense)
            batch_spec(2 * Lp),          # [mu | logvar] slab (f32, lane-dense)
        ),
        out_shape=(
            jax.ShapeDtypeStruct((b_pad, Sp), jnp.bfloat16),
            jax.ShapeDtypeStruct((b_pad, 2 * Lp), jnp.float32),
        ),
        compiler_params=pltpu.CompilerParams(
            dimension_semantics=("parallel",),
            vmem_limit_bytes=vmem_limit,
        ),
        cost_estimate=pl.CostEstimate(
            flops=flops,
            transcendentals=transcendentals,
            bytes_accessed=bytes_accessed,
        ),
    )(
        x_bf, eps_p,
        params["w1"], params["b1"],
        params["w_enc"], params["b_enc"],
        params["w3"], params["b3"],
        params["w4"], params["b4"],
    )

    recon = recon[:B, :S].astype(jnp.float32)
    mu = mulv[:B, :L]
    logvar = mulv[:B, Lp:Lp + L]
    return recon, mu, logvar


# ----------------------------------------------------------------------------- params


def init_params(key, segment_length, n_units, latent_dim):
    """PyTorch-style nn.Linear init; weights stored transposed as (in, out)."""
    ks = jax.random.split(key, 10)

    def linear(kw, kb, fan_in, fan_out):
        bound = 1.0 / math.sqrt(fan_in)
        w = jax.random.uniform(kw, (fan_in, fan_out), jnp.float32, -bound, bound)
        b = jax.random.uniform(kb, (1, fan_out), jnp.float32, -bound, bound)
        return w, b

    w1, b1 = linear(ks[0], ks[1], segment_length, n_units)
    w21, b21 = linear(ks[2], ks[3], n_units, latent_dim)
    w22, b22 = linear(ks[4], ks[5], n_units, latent_dim)
    w3, b3 = linear(ks[6], ks[7], latent_dim, n_units)
    w4, b4 = linear(ks[8], ks[9], n_units, segment_length)
    return dict(w1=w1, b1=b1, w21=w21, b21=b21, w22=w22, b22=b22,
                w3=w3, b3=b3, w4=w4, b4=b4)


def pack_params(raw, segment_length, n_units, latent_dim):
    """Fuse fc21/fc22, zero-pad output widths to 128-lane multiples, cast matmul
    weights to bf16 (MXU operands); biases stay f32."""
    S, H, L = segment_length, n_units, latent_dim
    Lp = _round_up(L, 128)
    Sp = _round_up(S, 128)
    bf16 = jnp.bfloat16
    f32 = jnp.float32

    w_enc = jnp.zeros((H, 2 * Lp), f32)
    w_enc = w_enc.at[:, :L].set(raw["w21"]).at[:, Lp:Lp + L].set(raw["w22"])
    b_enc = jnp.zeros((1, 2 * Lp), f32)
    b_enc = b_enc.at[:, :L].set(raw["b21"]).at[:, Lp:Lp + L].set(raw["b22"])

    w3 = jnp.zeros((Lp, H), f32).at[:L, :].set(raw["w3"])
    w4 = jnp.zeros((H, Sp), f32).at[:, :S].set(raw["w4"])
    b4 = jnp.zeros((1, Sp), f32).at[:, :S].set(raw["b4"])

    return dict(
        w1=raw["w1"].astype(bf16), b1=raw["b1"],
        w_enc=w_enc.astype(bf16), b_enc=b_enc,
        w3=w3.astype(bf16), b3=raw["b3"],
        w4=w4.astype(bf16), b4=b4,
    )


# ----------------------------------------------------------------------------- references


def vae_forward_ref(x, eps, packed):
    """Pure-JAX reference with the same bf16-operand / f32-accumulate matmuls
    and the same lane padding as the kernel."""
    f32 = jnp.float32

    def dot(a, w):
        return jnp.dot(a.astype(jnp.bfloat16), w, preferred_element_type=f32)

    B, S = x.shape
    L = eps.shape[1]
    Lp = packed["w3"].shape[0]
    eps_p = jnp.zeros((B, Lp), f32).at[:, :L].set(eps)

    h1 = jnp.maximum(dot(x, packed["w1"]) + packed["b1"], 0.0)
    mulv = dot(h1, packed["w_enc"]) + packed["b_enc"]
    mu, logvar = mulv[:, :Lp], mulv[:, Lp:]
    z = mu + eps_p * jnp.exp(0.5 * logvar)
    h3 = jnp.maximum(dot(z, packed["w3"]) + packed["b3"], 0.0)
    recon = jnp.tanh(dot(h3, packed["w4"]) + packed["b4"])
    return recon[:, :S], mu[:, :L], logvar[:, :L]


def vae_forward_ref_f32(x, eps, raw):
    """Full-f32 reference of the original PyTorch module math (semantic check)."""
    h1 = jnp.maximum(x @ raw["w1"] + raw["b1"], 0.0)
    mu = h1 @ raw["w21"] + raw["b21"]
    logvar = h1 @ raw["w22"] + raw["b22"]
    z = mu + eps * jnp.exp(0.5 * logvar)
    h3 = jnp.maximum(z @ raw["w3"] + raw["b3"], 0.0)
    recon = jnp.tanh(h3 @ raw["w4"] + raw["b4"])
    return recon, mu, logvar


# ----------------------------------------------------------------------------- demo


if __name__ == "__main__":
    segment_length, n_units, latent_dim = 16, 32, 8
    batch = 32  # small demo; tile picker keeps >= 2 grid steps (TB = 16)

    key = jax.random.PRNGKey(0)
    k_params, k_x, k_eps = jax.random.split(key, 3)

    raw = init_params(k_params, segment_length, n_units, latent_dim)
    packed = pack_params(raw, segment_length, n_units, latent_dim)

    # `forward` does x.view(-1, segment_length); emulate with a reshape (glue).
    x_raw = jax.random.normal(k_x, (batch, 1, segment_length), jnp.float32)
    x = x_raw.reshape(-1, segment_length)
    # torch.randn_like noise generated outside (deterministic) and passed in.
    eps = jax.random.normal(k_eps, (x.shape[0], latent_dim), jnp.float32)

    recon, mu, logvar = vae_forward(x, eps, packed)
    jax.block_until_ready((recon, mu, logvar))

    # exact-path check vs a reference using the same bf16 MXU operands / padding
    r_ref, mu_ref, lv_ref = vae_forward_ref(x, eps, packed)
    assert jnp.allclose(recon, r_ref, atol=1e-2, rtol=1e-2), "recon mismatch"
    assert jnp.allclose(mu, mu_ref, atol=1e-2, rtol=1e-2), "mu mismatch"
    assert jnp.allclose(logvar, lv_ref, atol=1e-2, rtol=1e-2), "logvar mismatch"

    # semantic check vs the original full-f32 module math (bf16 rounding slack)
    r32, mu32, lv32 = vae_forward_ref_f32(x, eps, raw)
    assert jnp.allclose(recon, r32, atol=7e-2, rtol=7e-2), "recon f32 drift"
    assert jnp.allclose(mu, mu32, atol=7e-2, rtol=7e-2), "mu f32 drift"
    assert jnp.allclose(logvar, lv32, atol=7e-2, rtol=7e-2), "logvar f32 drift"

    print("KERNEL_OK")
</pallas_src>

<mosaic_0001>
module attributes {stable_mosaic.version = 11 : i64} {
  func.func @vae_fwd_kernel(%arg0: i32, %arg1: memref<16x16xbf16, #tpu.memory_space<vmem>>, %arg2: memref<16x128xf32, #tpu.memory_space<vmem>>, %arg3: memref<16x32xbf16, #tpu.memory_space<vmem>>, %arg4: memref<1x32xf32, #tpu.memory_space<vmem>>, %arg5: memref<32x256xbf16, #tpu.memory_space<vmem>>, %arg6: memref<1x256xf32, #tpu.memory_space<vmem>>, %arg7: memref<128x32xbf16, #tpu.memory_space<vmem>>, %arg8: memref<1x32xf32, #tpu.memory_space<vmem>>, %arg9: memref<32x128xbf16, #tpu.memory_space<vmem>>, %arg10: memref<1x128xf32, #tpu.memory_space<vmem>>, %arg11: memref<16x128xbf16, #tpu.memory_space<vmem>>, %arg12: memref<16x256xf32, #tpu.memory_space<vmem>>) attributes {dimension_semantics = [#tpu.dimension_semantics<parallel>], iteration_bounds = array<i64: 2>, scalar_prefetch = 0 : i64, scratch_operands = 0 : i64, tpu.core_type = #tpu.core_type<tc>, window_params = [{transform_indices = @transform_0, window_bounds = array<i64: 16, 16>}, {transform_indices = @transform_1, window_bounds = array<i64: 16, 128>}, {pipeline_mode = #tpu.pipeline_mode<synchronous>, transform_indices = @transform_2, window_bounds = array<i64: 16, 32>}, {pipeline_mode = #tpu.pipeline_mode<synchronous>, transform_indices = @transform_3, window_bounds = array<i64: 1, 32>}, {pipeline_mode = #tpu.pipeline_mode<synchronous>, transform_indices = @transform_4, window_bounds = array<i64: 32, 256>}, {pipeline_mode = #tpu.pipeline_mode<synchronous>, transform_indices = @transform_5, window_bounds = array<i64: 1, 256>}, {pipeline_mode = #tpu.pipeline_mode<synchronous>, transform_indices = @transform_6, window_bounds = array<i64: 128, 32>}, {pipeline_mode = #tpu.pipeline_mode<synchronous>, transform_indices = @transform_7, window_bounds = array<i64: 1, 32>}, {pipeline_mode = #tpu.pipeline_mode<synchronous>, transform_indices = @transform_8, window_bounds = array<i64: 32, 128>}, {pipeline_mode = #tpu.pipeline_mode<synchronous>, transform_indices = @transform_9, window_bounds = array<i64: 1, 128>}, {transform_indices = @transform_10, window_bounds = array<i64: 16, 128>}, {transform_indices = @transform_11, window_bounds = array<i64: 16, 256>}]} {
    %c0 = arith.constant 0 : index
    %c0_0 = arith.constant 0 : index
    %0 = vector.load %arg1[%c0, %c0_0] : memref<16x16xbf16, #tpu.memory_space<vmem>>, vector<16x16xbf16>
    %c0_1 = arith.constant 0 : index
    %c0_2 = arith.constant 0 : index
    %1 = vector.load %arg3[%c0_1, %c0_2] : memref<16x32xbf16, #tpu.memory_space<vmem>>, vector<16x32xbf16>
    %cst = arith.constant dense<0.000000e+00> : vector<16x32xf32>
    %2 = tpu.matmul %0, %1, %cst {dimension_numbers = #tpu.dot_dimension_numbers<[1], [0], [0], [1], [0, 0, 1, 1], [], []>} : vector<16x16xbf16>, vector<16x32xbf16>, vector<16x32xf32> -> vector<16x32xf32>
    %c0_3 = arith.constant 0 : index
    %c0_4 = arith.constant 0 : index
    %3 = vector.load %arg4[%c0_3, %c0_4] : memref<1x32xf32, #tpu.memory_space<vmem>>, vector<1x32xf32>
    %4 = vector.broadcast %3 : vector<1x32xf32> to vector<16x32xf32>
    %5 = arith.addf %2, %4 : vector<16x32xf32>
    %cst_5 = arith.constant 0.000000e+00 : f32
    %6 = vector.broadcast %cst_5 : f32 to vector<16x32xf32>
    %7 = arith.maximumf %5, %6 : vector<16x32xf32>
    %8 = arith.truncf %7 : vector<16x32xf32> to vector<16x32xbf16>
    %c0_6 = arith.constant 0 : index
    %c0_7 = arith.constant 0 : index
    %9 = vector.load %arg5[%c0_6, %c0_7] : memref<32x256xbf16, #tpu.memory_space<vmem>>, vector<32x256xbf16>
    %cst_8 = arith.constant dense<0.000000e+00> : vector<16x256xf32>
    %10 = tpu.matmul %8, %9, %cst_8 {dimension_numbers = #tpu.dot_dimension_numbers<[1], [0], [0], [1], [0, 0, 1, 1], [], []>} : vector<16x32xbf16>, vector<32x256xbf16>, vector<16x256xf32> -> vector<16x256xf32>
    %c0_9 = arith.constant 0 : index
    %c0_10 = arith.constant 0 : index
    %11 = vector.load %arg6[%c0_9, %c0_10] : memref<1x256xf32, #tpu.memory_space<vmem>>, vector<1x256xf32>
    %12 = vector.broadcast %11 : vector<1x256xf32> to vector<16x256xf32>
    %13 = arith.addf %10, %12 : vector<16x256xf32>
    %14 = vector.extract_strided_slice %13 {offsets = [0, 0], sizes = [16, 128], strides = [1, 1]} : vector<16x256xf32> to vector<16x128xf32>
    %15 = vector.extract_strided_slice %13 {offsets = [0, 128], sizes = [16, 128], strides = [1, 1]} : vector<16x256xf32> to vector<16x128xf32>
    %c0_11 = arith.constant 0 : index
    %c0_12 = arith.constant 0 : index
    %16 = vector.load %arg2[%c0_11, %c0_12] : memref<16x128xf32, #tpu.memory_space<vmem>>, vector<16x128xf32>
    %cst_13 = arith.constant 5.000000e-01 : f32
    %17 = vector.broadcast %cst_13 : f32 to vector<16x128xf32>
    %18 = arith.mulf %17, %15 : vector<16x128xf32>
    %19 = math.exp %18 : vector<16x128xf32>
    %20 = arith.mulf %16, %19 : vector<16x128xf32>
    %21 = arith.addf %14, %20 : vector<16x128xf32>
    %22 = arith.truncf %21 : vector<16x128xf32> to vector<16x128xbf16>
    %c0_14 = arith.constant 0 : index
    %c0_15 = arith.constant 0 : index
    %23 = vector.load %arg7[%c0_14, %c0_15] : memref<128x32xbf16, #tpu.memory_space<vmem>>, vector<128x32xbf16>
    %cst_16 = arith.constant dense<0.000000e+00> : vector<16x32xf32>
    %24 = tpu.matmul %22, %23, %cst_16 {dimension_numbers = #tpu.dot_dimension_numbers<[1], [0], [0], [1], [0, 0, 1, 1], [], []>} : vector<16x128xbf16>, vector<128x32xbf16>, vector<16x32xf32> -> vector<16x32xf32>
    %c0_17 = arith.constant 0 : index
    %c0_18 = arith.constant 0 : index
    %25 = vector.load %arg8[%c0_17, %c0_18] : memref<1x32xf32, #tpu.memory_space<vmem>>, vector<1x32xf32>
    %26 = vector.broadcast %25 : vector<1x32xf32> to vector<16x32xf32>
    %27 = arith.addf %24, %26 : vector<16x32xf32>
    %cst_19 = arith.constant 0.000000e+00 : f32
    %28 = vector.broadcast %cst_19 : f32 to vector<16x32xf32>
    %29 = arith.maximumf %27, %28 : vector<16x32xf32>
    %30 = arith.truncf %29 : vector<16x32xf32> to vector<16x32xbf16>
    %c0_20 = arith.constant 0 : index
    %c0_21 = arith.constant 0 : index
    %31 = vector.load %arg9[%c0_20, %c0_21] : memref<32x128xbf16, #tpu.memory_space<vmem>>, vector<32x128xbf16>
    %cst_22 = arith.constant dense<0.000000e+00> : vector<16x128xf32>
    %32 = tpu.matmul %30, %31, %cst_22 {dimension_numbers = #tpu.dot_dimension_numbers<[1], [0], [0], [1], [0, 0, 1, 1], [], []>} : vector<16x32xbf16>, vector<32x128xbf16>, vector<16x128xf32> -> vector<16x128xf32>
    %c0_23 = arith.constant 0 : index
    %c0_24 = arith.constant 0 : index
    %33 = vector.load %arg10[%c0_23, %c0_24] : memref<1x128xf32, #tpu.memory_space<vmem>>, vector<1x128xf32>
    %34 = vector.broadcast %33 : vector<1x128xf32> to vector<16x128xf32>
    %35 = arith.addf %32, %34 : vector<16x128xf32>
    %36 = math.tanh %35 : vector<16x128xf32>
    %37 = arith.truncf %36 : vector<16x128xf32> to vector<16x128xbf16>
    %c0_25 = arith.constant 0 : index
    %c0_26 = arith.constant 0 : index
    %38 = vector.load %arg11[%c0_25, %c0_26] : memref<16x128xbf16, #tpu.memory_space<vmem>>, vector<16x128xbf16>
    tpu.vector_store %arg11[%c0_25, %c0_26], %37 {strides = array<i32>} : memref<16x128xbf16, #tpu.memory_space<vmem>>, vector<16x128xbf16>,
    %c0_27 = arith.constant 0 : index
    %c0_28 = arith.constant 0 : index
    %39 = vector.load %arg12[%c0_27, %c0_28] : memref<16x256xf32, #tpu.memory_space<vmem>>, vector<16x256xf32>
    tpu.vector_store %arg12[%c0_27, %c0_28], %13 {strides = array<i32>} : memref<16x256xf32, #tpu.memory_space<vmem>>, vector<16x256xf32>,
    return
  }
  func.func @transform_0(%arg0: i32) -> (i32, i32) {
    %c0_i32 = arith.constant 0 : i32
    %c0_i32_0 = arith.constant 0 : i32
    return %arg0, %c0_i32 : i32, i32
  }
  func.func @transform_1(%arg0: i32) -> (i32, i32) {
    %c0_i32 = arith.constant 0 : i32
    %c0_i32_0 = arith.constant 0 : i32
    return %arg0, %c0_i32 : i32, i32
  }
  func.func @transform_2(%arg0: i32) -> (i32, i32) {
    %c0_i32 = arith.constant 0 : i32
    %c0_i32_0 = arith.constant 0 : i32
    %c0_i32_1 = arith.constant 0 : i32
    return %c0_i32, %c0_i32_0 : i32, i32
  }
  func.func @transform_3(%arg0: i32) -> (i32, i32) {
    %c0_i32 = arith.constant 0 : i32
    %c0_i32_0 = arith.constant 0 : i32
    %c0_i32_1 = arith.constant 0 : i32
    return %c0_i32, %c0_i32_0 : i32, i32
  }
  func.func @transform_4(%arg0: i32) -> (i32, i32) {
    %c0_i32 = arith.constant 0 : i32
    %c0_i32_0 = arith.constant 0 : i32
    %c0_i32_1 = arith.constant 0 : i32
    return %c0_i32, %c0_i32_0 : i32, i32
  }
  func.func @transform_5(%arg0: i32) -> (i32, i32) {
    %c0_i32 = arith.constant 0 : i32
    %c0_i32_0 = arith.constant 0 : i32
    %c0_i32_1 = arith.constant 0 : i32
    return %c0_i32, %c0_i32_0 : i32, i32
  }
  func.func @transform_6(%arg0: i32) -> (i32, i32) {
    %c0_i32 = arith.constant 0 : i32
    %c0_i32_0 = arith.constant 0 : i32
    %c0_i32_1 = arith.constant 0 : i32
    return %c0_i32, %c0_i32_0 : i32, i32
  }
  func.func @transform_7(%arg0: i32) -> (i32, i32) {
    %c0_i32 = arith.constant 0 : i32
    %c0_i32_0 = arith.constant 0 : i32
    %c0_i32_1 = arith.constant 0 : i32
    return %c0_i32, %c0_i32_0 : i32, i32
  }
  func.func @transform_8(%arg0: i32) -> (i32, i32) {
    %c0_i32 = arith.constant 0 : i32
    %c0_i32_0 = arith.constant 0 : i32
    %c0_i32_1 = arith.constant 0 : i32
    return %c0_i32, %c0_i32_0 : i32, i32
  }
  func.func @transform_9(%arg0: i32) -> (i32, i32) {
    %c0_i32 = arith.constant 0 : i32
    %c0_i32_0 = arith.constant 0 : i32
    %c0_i32_1 = arith.constant 0 : i32
    return %c0_i32, %c0_i32_0 : i32, i32
  }
  func.func @transform_10(%arg0: i32) -> (i32, i32) {
    %c0_i32 = arith.constant 0 : i32
    %c0_i32_0 = arith.constant 0 : i32
    return %arg0, %c0_i32 : i32, i32
  }
  func.func @transform_11(%arg0: i32) -> (i32, i32) {
    %c0_i32 = arith.constant 0 : i32
    %c0_i32_0 = arith.constant 0 : i32
    return %arg0, %c0_i32 : i32, i32
  }
}

</mosaic_0001>

<llo_original>
// kernel: tpu_custom_call.1
$region0: #{tpu_custom_call.1}
  #allocation0 [shape = 'u32[]', space=smem, size = 0x4, offset = 0x4, fixed_abs, tag = 'smem constant byte address 0x4 - core index']
  #allocation1 [shape = 'u32[144,128]{1,0:T(1,128)}', space=vmem, size = 0x12000, scoped, tag = 'internal scratch']
  %s0 = inlined_call_operand.vmem [shape: bf16[32,16], index: 0, kind: input, shape index: {}]
  %s1 = inlined_call_operand.vmem [shape: f32[32,128], index: 1, kind: input, shape index: {}]
  %s2 = inlined_call_operand.vmem [shape: bf16[16,32], index: 2, kind: input, shape index: {}]
  %s3 = inlined_call_operand.vmem [shape: f32[1,32], index: 3, kind: input, shape index: {}]
  %s4 = inlined_call_operand.vmem [shape: bf16[32,256], index: 4, kind: input, shape index: {}]
  %s5 = inlined_call_operand.vmem [shape: f32[1,256], index: 5, kind: input, shape index: {}]
  %s6 = inlined_call_operand.vmem [shape: bf16[128,32], index: 6, kind: input, shape index: {}]
  %s7 = inlined_call_operand.vmem [shape: f32[1,32], index: 7, kind: input, shape index: {}]
  %s8 = inlined_call_operand.vmem [shape: bf16[32,128], index: 8, kind: input, shape index: {}]
  %s9 = inlined_call_operand.vmem [shape: f32[1,128], index: 9, kind: input, shape index: {}]
  %s10 = inlined_call_operand.hbm [shape: bf16[32,128], index: 10, kind: output, shape index: {0}]
  %s11 = inlined_call_operand.hbm [shape: f32[32,256], index: 11, kind: output, shape index: {1}]
  %12 = xla_tuple %s10, %s11
  %s13 = sld [smem:[#allocation0]]
  $region81: #{tpu_custom_call.1} parent=0
    _
  %s15 = ssub.s32 1, %s13
  %s16 = scalar_select 0, %s15, %s13
  $region1: #{tpu_custom_call.1} parent=0
    #allocation2 [shape = 'u8[8192]{0}', space=vmem, size = 0x2000, scoped, tag = 'output window, operand 0']
    #allocation3 [shape = 's32[2]{0}', space=sflag, size = 0x8, scoped, tag = 'scoped memory for tpu_custom_call.1']
    #allocation4 [shape = 'u8[32768]{0}', space=vmem, size = 0x8000, scoped, tag = 'output window, operand 1']
    #allocation5 [shape = 's32[2]{0}', space=sflag, size = 0x8, scoped, tag = 'scoped memory for tpu_custom_call.1']
    %17 = vsyncpa [#allocation3], 0
    %s18 = scalar_lea.sflag [#allocation3], 1
    %19 = vsyncpa %s18, 0
    %20 = vsyncpa [#allocation5], 0
    %s21 = scalar_lea.sflag [#allocation5], 1
    %22 = vsyncpa %s21, 0
    loop: start=0, step=1, limit=4
    $region2: #{tpu_custom_call.1} parent=1 // loop_pre_header
      _
    $region3: #{tpu_custom_call.1} parent=1 // loop_header
      %s24 = sphi 0, %s28
      %p25 = scmp.ge.s32.totalorder %s24, 4
      %s34 = sphi 0, %s36
      %s37 = sphi 0, %s34
      %s38 = sphi 0, %s37
      %s54 = sphi 0, %s38
      %s60 = sphi 0, %s62
      %s63 = sphi 0, %s60
      %s64 = sphi 0, %s63
      %s80 = sphi 0, %s64
      %s84 = sphi 0, %s84
      %s86 = sphi 0, %s84
      %s87 = sphi 0, %s86
      %s101 = sphi 0, %s87
      %s105 = sphi 0, %s105
      %s107 = sphi 0, %s105
      %s108 = sphi 0, %s107
      %s122 = sphi 0, %s108
      %s126 = sphi 0, %s126
      %s128 = sphi 0, %s126
      %s129 = sphi 0, %s128
      %s143 = sphi 0, %s129
      %s147 = sphi 0, %s147
      %s149 = sphi 0, %s147
      %s150 = sphi 0, %s149
      %s164 = sphi 0, %s150
      %s168 = sphi 0, %s168
      %s170 = sphi 0, %s168
      %s171 = sphi 0, %s170
      %s185 = sphi 0, %s171
      %s189 = sphi 0, %s189
      %s191 = sphi 0, %s189
      %s192 = sphi 0, %s191
      %s206 = sphi 0, %s192
      %s210 = sphi 0, %s210
      %s212 = sphi 0, %s210
      %s213 = sphi 0, %s212
      %s227 = sphi 0, %s213
      %s231 = sphi 0, %s231
      %s233 = sphi 0, %s231
      %s234 = sphi 0, %s233
      %s248 = sphi 0, %s234
      %s254 = sphi 0, %s256
      %s257 = sphi 0, %s254
      %s258 = sphi 0, %s257
      %s274 = sphi 0, %s258
      %s280 = sphi 0, %s282
      %s283 = sphi 0, %s280
      %s284 = sphi 0, %s283
      %s300 = sphi 0, %s284
    $region4: #{tpu_custom_call.1} parent=1 // loop_header_branch
      %27 = sbr.rel (%p25) target = $region8
    $region5: #{tpu_custom_call.1} parent=1 // loop_body
      %s29 = ssub.s32 %s24, 1
      %s30 = ssub.s32 %s24, 2
      %s31 = sadd.s32 %s24, 1
      %s32 = ssub.s32 %s24, %s31
      %p33 = scmp.eq.s32.totalorder %s32, 0
      %s35 = sadd.s32 %s34, 1
      %s36 = scalar_select %p33, %s34, %s35
      %p39 = pneg %p33
      %p40 = scmp.eq.s32.totalorder %s24, 1
      %p41 = por %p39, %p40
      %p42 = scmp.ne.s32.totalorder %s34, %s37
      %p43 = scmp.eq.s32.totalorder %s24, 0
      %p44 = por %p42, %p43
      %p45 = scmp.ne.s32.totalorder %s34, %s37
      %p46 = scmp.eq.s32.totalorder %s29, 1
      %p47 = por %p45, %p46
      %p48 = scmp.ne.s32.totalorder %s37, %s38
      %p49 = scmp.eq.s32.totalorder %s29, 0
      %p50 = por %p48, %p49
      %p51 = scmp.ne.s32.totalorder %s37, %s38
      %p52 = scmp.eq.s32.totalorder %s30, 1
      %p53 = por %p51, %p52
      %p55 = scmp.ne.s32.totalorder %s38, %s54
      %p56 = scmp.eq.s32.totalorder %s30, 0
      %p57 = por %p55, %p56
      %s58 = ssub.s32 %s24, %s31
      %p59 = scmp.eq.s32.totalorder %s58, 0
      %s61 = sadd.s32 %s60, 1
      %s62 = scalar_select %p59, %s60, %s61
      %p65 = pneg %p59
      %p66 = scmp.eq.s32.totalorder %s24, 1
      %p67 = por %p65, %p66
      %p68 = scmp.ne.s32.totalorder %s60, %s63
      %p69 = scmp.eq.s32.totalorder %s24, 0
      %p70 = por %p68, %p69
      %p71 = scmp.ne.s32.totalorder %s60, %s63
      %p72 = scmp.eq.s32.totalorder %s29, 1
      %p73 = por %p71, %p72
      %p74 = scmp.ne.s32.totalorder %s63, %s64
      %p75 = scmp.eq.s32.totalorder %s29, 0
      %p76 = por %p74, %p75
      %p77 = scmp.ne.s32.totalorder %s63, %s64
      %p78 = scmp.eq.s32.totalorder %s30, 1
      %p79 = por %p77, %p78
      %p81 = scmp.ne.s32.totalorder %s64, %s80
      %p82 = scmp.eq.s32.totalorder %s30, 0
      %p83 = por %p81, %p82
      %s85 = sadd.s32 %s84, 1
      %p88 = scmp.eq.s32.totalorder %s24, 1
      %p89 = scmp.ne.s32.totalorder %s84, %s86
      %p90 = scmp.eq.s32.totalorder %s24, 0
      %p91 = por %p89, %p90
      %p92 = scmp.ne.s32.totalorder %s84, %s86
      %p93 = scmp.eq.s32.totalorder %s29, 1
      %p94 = por %p92, %p93
      %p95 = scmp.ne.s32.totalorder %s86, %s87
      %p96 = scmp.eq.s32.totalorder %s29, 0
      %p97 = por %p95, %p96
      %p98 = scmp.ne.s32.totalorder %s86, %s87
      %p99 = scmp.eq.s32.totalorder %s30, 1
      %p100 = por %p98, %p99
      %p102 = scmp.ne.s32.totalorder %s87, %s101
      %p103 = scmp.eq.s32.totalorder %s30, 0
      %p104 = por %p102, %p103
      %s106 = sadd.s32 %s105, 1
      %p109 = scmp.eq.s32.totalorder %s24, 1
      %p110 = scmp.ne.s32.totalorder %s105, %s107
      %p111 = scmp.eq.s32.totalorder %s24, 0
      %p112 = por %p110, %p111
      %p113 = scmp.ne.s32.totalorder %s105, %s107
      %p114 = scmp.eq.s32.totalorder %s29, 1
      %p115 = por %p113, %p114
      %p116 = scmp.ne.s32.totalorder %s107, %s108
      %p117 = scmp.eq.s32.totalorder %s29, 0
      %p118 = por %p116, %p117
      %p119 = scmp.ne.s32.totalorder %s107, %s108
      %p120 = scmp.eq.s32.totalorder %s30, 1
      %p121 = por %p119, %p120
      %p123 = scmp.ne.s32.totalorder %s108, %s122
      %p124 = scmp.eq.s32.totalorder %s30, 0
      %p125 = por %p123, %p124
      %s127 = sadd.s32 %s126, 1
      %p130 = scmp.eq.s32.totalorder %s24, 1
      %p131 = scmp.ne.s32.totalorder %s126, %s128
      %p132 = scmp.eq.s32.totalorder %s24, 0
      %p133 = por %p131, %p132
      %p134 = scmp.ne.s32.totalorder %s126, %s128
      %p135 = scmp.eq.s32.totalorder %s29, 1
      %p136 = por %p134, %p135
      %p137 = scmp.ne.s32.totalorder %s128, %s129
      %p138 = scmp.eq.s32.totalorder %s29, 0
      %p139 = por %p137, %p138
      %p140 = scmp.ne.s32.totalorder %s128, %s129
      %p141 = scmp.eq.s32.totalorder %s30, 1
      %p142 = por %p140, %p141
      %p144 = scmp.ne.s32.totalorder %s129, %s143
      %p145 = scmp.eq.s32.totalorder %s30, 0
      %p146 = por %p144, %p145
      %s148 = sadd.s32 %s147, 1
      %p151 = scmp.eq.s32.totalorder %s24, 1
      %p152 = scmp.ne.s32.totalorder %s147, %s149
      %p153 = scmp.eq.s32.totalorder %s24, 0
      %p154 = por %p152, %p153
      %p155 = scmp.ne.s32.totalorder %s147, %s149
      %p156 = scmp.eq.s32.totalorder %s29, 1
      %p157 = por %p155, %p156
      %p158 = scmp.ne.s32.totalorder %s149, %s150
      %p159 = scmp.eq.s32.totalorder %s29, 0
      %p160 = por %p158, %p159
      %p161 = scmp.ne.s32.totalorder %s149, %s150
      %p162 = scmp.eq.s32.totalorder %s30, 1
      %p163 = por %p161, %p162
      %p165 = scmp.ne.s32.totalorder %s150, %s164
      %p166 = scmp.eq.s32.totalorder %s30, 0
      %p167 = por %p165, %p166
      %s169 = sadd.s32 %s168, 1
      %p172 = scmp.eq.s32.totalorder %s24, 1
      %p173 = scmp.ne.s32.totalorder %s168, %s170
      %p174 = scmp.eq.s32.totalorder %s24, 0
      %p175 = por %p173, %p174
      %p176 = scmp.ne.s32.totalorder %s168, %s170
      %p177 = scmp.eq.s32.totalorder %s29, 1
      %p178 = por %p176, %p177
      %p179 = scmp.ne.s32.totalorder %s170, %s171
      %p180 = scmp.eq.s32.totalorder %s29, 0
      %p181 = por %p179, %p180
      %p182 = scmp.ne.s32.totalorder %s170, %s171
      %p183 = scmp.eq.s32.totalorder %s30, 1
      %p184 = por %p182, %p183
      %p186 = scmp.ne.s32.totalorder %s171, %s185
      %p187 = scmp.eq.s32.totalorder %s30, 0
      %p188 = por %p186, %p187
      %s190 = sadd.s32 %s189, 1
      %p193 = scmp.eq.s32.totalorder %s24, 1
      %p194 = scmp.ne.s32.totalorder %s189, %s191
      %p195 = scmp.eq.s32.totalorder %s24, 0
      %p196 = por %p194, %p195
      %p197 = scmp.ne.s32.totalorder %s189, %s191
      %p198 = scmp.eq.s32.totalorder %s29, 1
      %p199 = por %p197, %p198
      %p200 = scmp.ne.s32.totalorder %s191, %s192
      %p201 = scmp.eq.s32.totalorder %s29, 0
      %p202 = por %p200, %p201
      %p203 = scmp.ne.s32.totalorder %s191, %s192
      %p204 = scmp.eq.s32.totalorder %s30, 1
      %p205 = por %p203, %p204
      %p207 = scmp.ne.s32.totalorder %s192, %s206
      %p208 = scmp.eq.s32.totalorder %s30, 0
      %p209 = por %p207, %p208
      %s211 = sadd.s32 %s210, 1
      %p214 = scmp.eq.s32.totalorder %s24, 1
      %p215 = scmp.ne.s32.totalorder %s210, %s212
      %p216 = scmp.eq.s32.totalorder %s24, 0
      %p217 = por %p215, %p216
      %p218 = scmp.ne.s32.totalorder %s210, %s212
      %p219 = scmp.eq.s32.totalorder %s29, 1
      %p220 = por %p218, %p219
      %p221 = scmp.ne.s32.totalorder %s212, %s213
      %p222 = scmp.eq.s32.totalorder %s29, 0
      %p223 = por %p221, %p222
      %p224 = scmp.ne.s32.totalorder %s212, %s213
      %p225 = scmp.eq.s32.totalorder %s30, 1
      %p226 = por %p224, %p225
      %p228 = scmp.ne.s32.totalorder %s213, %s227
      %p229 = scmp.eq.s32.totalorder %s30, 0
      %p230 = por %p228, %p229
      %s232 = sadd.s32 %s231, 1
      %p235 = scmp.eq.s32.totalorder %s24, 1
      %p236 = scmp.ne.s32.totalorder %s231, %s233
      %p237 = scmp.eq.s32.totalorder %s24, 0
      %p238 = por %p236, %p237
      %p239 = scmp.ne.s32.totalorder %s231, %s233
      %p240 = scmp.eq.s32.totalorder %s29, 1
      %p241 = por %p239, %p240
      %p242 = scmp.ne.s32.totalorder %s233, %s234
      %p243 = scmp.eq.s32.totalorder %s29, 0
      %p244 = por %p242, %p243
      %p245 = scmp.ne.s32.totalorder %s233, %s234
      %p246 = scmp.eq.s32.totalorder %s30, 1
      %p247 = por %p245, %p246
      %p249 = scmp.ne.s32.totalorder %s234, %s248
      %p250 = scmp.eq.s32.totalorder %s30, 0
      %p251 = por %p249, %p250
      %s252 = ssub.s32 %s24, %s31
      %p253 = scmp.eq.s32.totalorder %s252, 0
      %s255 = sadd.s32 %s254, 1
      %s256 = scalar_select %p253, %s254, %s255
      %p259 = pneg %p253
      %p260 = scmp.eq.s32.totalorder %s24, 1
      %p261 = por %p259, %p260
      %p262 = scmp.ne.s32.totalorder %s254, %s257
      %p263 = scmp.eq.s32.totalorder %s24, 0
      %p264 = por %p262, %p263
      %p265 = scmp.ne.s32.totalorder %s254, %s257
      %p266 = scmp.eq.s32.totalorder %s29, 1
      %p267 = por %p265, %p266
      %p268 = scmp.ne.s32.totalorder %s257, %s258
      %p269 = scmp.eq.s32.totalorder %s29, 0
      %p270 = por %p268, %p269
      %p271 = scmp.ne.s32.totalorder %s257, %s258
      %p272 = scmp.eq.s32.totalorder %s30, 1
      %p273 = por %p271, %p272
      %p275 = scmp.ne.s32.totalorder %s258, %s274
      %p276 = scmp.eq.s32.totalorder %s30, 0
      %p277 = por %p275, %p276
      %s278 = ssub.s32 %s24, %s31
      %p279 = scmp.eq.s32.totalorder %s278, 0
      %s281 = sadd.s32 %s280, 1
      %s282 = scalar_select %p279, %s280, %s281
      %p285 = pneg %p279
      %p286 = scmp.eq.s32.totalorder %s24, 1
      %p287 = por %p285, %p286
      %p288 = scmp.ne.s32.totalorder %s280, %s283
      %p289 = scmp.eq.s32.totalorder %s24, 0
      %p290 = por %p288, %p289
      %p291 = scmp.ne.s32.totalorder %s280, %s283
      %p292 = scmp.eq.s32.totalorder %s29, 1
      %p293 = por %p291, %p292
      %p294 = scmp.ne.s32.totalorder %s283, %s284
      %p295 = scmp.eq.s32.totalorder %s29, 0
      %p296 = por %p294, %p295
      %p297 = scmp.ne.s32.totalorder %s283, %s284
      %p298 = scmp.eq.s32.totalorder %s30, 1
      %p299 = por %p297, %p298
      %p301 = scmp.ne.s32.totalorder %s284, %s300
      %p302 = scmp.eq.s32.totalorder %s30, 0
      %p303 = por %p301, %p302
      %p304 = scmp.le.s32.totalorder 1, %s24
      %p305 = scmp.lt.s32.totalorder %s24, 3
      %p306 = pnand %p304, %p305
      %p307 = pneg %p306
      // Predicated region
      $region9: #{tpu_custom_call.1} parent=5 // pred_check
        _
      $region10: #{tpu_custom_call.1} parent=5 // pred_check_branch
        %309 = sbr.rel (%p306) target = $region12
      $region11: #{tpu_custom_call.1} parent=5 // pred_region
        %s310 = ssub.s32 %s24, 1
        // Predicated region
        $region13: #{tpu_custom_call.1} parent=11 // pred_check
          %p311 = pneg %p97
        $region14: #{tpu_custom_call.1} parent=11 // pred_check_branch
          %313 = sbr.rel (%p311) target = $region16
        $region15: #{tpu_custom_call.1} parent=11 // pred_region
          _
        $region16: #{tpu_custom_call.1} parent=11 // pred_fallthru
          _
        // Predicated region
        $region17: #{tpu_custom_call.1} parent=11 // pred_check
          %p314 = pneg %p118
        $region18: #{tpu_custom_call.1} parent=11 // pred_check_branch
          %316 = sbr.rel (%p314) target = $region20
        $region19: #{tpu_custom_call.1} parent=11 // pred_region
          _
        $region20: #{tpu_custom_call.1} parent=11 // pred_fallthru
          _
        // Predicated region
        $region21: #{tpu_custom_call.1} parent=11 // pred_check
          %p317 = pneg %p139
        $region22: #{tpu_custom_call.1} parent=11 // pred_check_branch
          %319 = sbr.rel (%p317) target = $region24
        $region23: #{tpu_custom_call.1} parent=11 // pred_region
          _
        $region24: #{tpu_custom_call.1} parent=11 // pred_fallthru
          _
        // Predicated region
        $region25: #{tpu_custom_call.1} parent=11 // pred_check
          %p320 = pneg %p160
        $region26: #{tpu_custom_call.1} parent=11 // pred_check_branch
          %322 = sbr.rel (%p320) target = $region28
        $region27: #{tpu_custom_call.1} parent=11 // pred_region
          _
        $region28: #{tpu_custom_call.1} parent=11 // pred_fallthru
          _
        // Predicated region
        $region29: #{tpu_custom_call.1} parent=11 // pred_check
          %p323 = pneg %p181
        $region30: #{tpu_custom_call.1} parent=11 // pred_check_branch
          %325 = sbr.rel (%p323) target = $region32
        $region31: #{tpu_custom_call.1} parent=11 // pred_region
          _
        $region32: #{tpu_custom_call.1} parent=11 // pred_fallthru
          _
        // Predicated region
        $region33: #{tpu_custom_call.1} parent=11 // pred_check
          %p326 = pneg %p202
        $region34: #{tpu_custom_call.1} parent=11 // pred_check_branch
          %328 = sbr.rel (%p326) target = $region36
        $region35: #{tpu_custom_call.1} parent=11 // pred_region
          _
        $region36: #{tpu_custom_call.1} parent=11 // pred_fallthru
          _
        // Predicated region
        $region37: #{tpu_custom_call.1} parent=11 // pred_check
          %p329 = pneg %p223
        $region38: #{tpu_custom_call.1} parent=11 // pred_check_branch
          %331 = sbr.rel (%p329) target = $region40
        $region39: #{tpu_custom_call.1} parent=11 // pred_region
          _
        $region40: #{tpu_custom_call.1} parent=11 // pred_fallthru
          _
        // Predicated region
        $region41: #{tpu_custom_call.1} parent=11 // pred_check
          %p332 = pneg %p244
        $region42: #{tpu_custom_call.1} parent=11 // pred_check_branch
          %334 = sbr.rel (%p332) target = $region44
        $region43: #{tpu_custom_call.1} parent=11 // pred_region
          _
        $region44: #{tpu_custom_call.1} parent=11 // pred_fallthru
          _
      $region12: #{tpu_custom_call.1} parent=5 // pred_fallthru
        _
      %p335 = scmp.lt.s32.totalorder %s24, 2
      // Predicated region
      $region45: #{tpu_custom_call.1} parent=5 // pred_check
        %p336 = pneg %p335
      $region46: #{tpu_custom_call.1} parent=5 // pred_check_branch
        %338 = sbr.rel (%p336) target = $region48
      $region47: #{tpu_custom_call.1} parent=5 // pred_region
        // Predicated region
        $region49: #{tpu_custom_call.1} parent=47 // pred_check
          %p339 = pneg %p44
        $region50: #{tpu_custom_call.1} parent=47 // pred_check_branch
          %341 = sbr.rel (%p339) target = $region52
        $region51: #{tpu_custom_call.1} parent=47 // pred_region
          %s342 = smul.u32 2, %s24
          %p343 = scmp.lt.s32.totalorder %s342, 3
          %s344 = scalar_select %p343, %s342, 3
          %s345 = smul.addr %s344, 4
          %s346 = scalar_lea.vmem %s0, %s345
          %s347 = smul.u32 2, %s24
        $region52: #{tpu_custom_call.1} parent=47 // pred_fallthru
          _
        // Predicated region
        $region53: #{tpu_custom_call.1} parent=47 // pred_check
          %p348 = pneg %p70
        $region54: #{tpu_custom_call.1} parent=47 // pred_check_branch
          %350 = sbr.rel (%p348) target = $region56
        $region55: #{tpu_custom_call.1} parent=47 // pred_region
          %s351 = smul.u32 2, %s24
          %p352 = scmp.lt.s32.totalorder %s351, 3
          %s353 = scalar_select %p352, %s351, 3
          %s354 = smul.addr %s353, 8
          %s355 = scalar_lea.vmem %s1, %s354
          %s356 = smul.u32 2, %s24
        $region56: #{tpu_custom_call.1} parent=47 // pred_fallthru
          _
      $region48: #{tpu_custom_call.1} parent=5 // pred_fallthru
        _
      %p357 = scmp.le.s32.totalorder 1, %s24
      %p358 = scmp.lt.s32.totalorder %s24, 3
      %p359 = pnand %p357, %p358
      %p360 = pneg %p359
      // Predicated region
      $region57: #{tpu_custom_call.1} parent=5 // pred_check
        _
      $region58: #{tpu_custom_call.1} parent=5 // pred_check_branch
        %362 = sbr.rel (%p359) target = $region60
      $region59: #{tpu_custom_call.1} parent=5 // pred_region
        %s363 = ssub.s32 %s24, 1
        %s364 = smul.u32 2, %s29
        %p365 = scmp.lt.s32.totalorder %s364, 3
        %s366 = scalar_select %p365, %s364, 3
        %s367 = smul.addr %s366, 4
        %s368 = scalar_lea.vmem %s0, %s367
        %p369 = pneg %p50
        %p370 = pneg %p47
        %s371 = smul.u32 2, %s29
        %p372 = scmp.lt.s32.totalorder %s371, 3
        %s373 = scalar_select %p372, %s371, 3
        %s374 = smul.addr %s373, 8
        %s375 = scalar_lea.vmem %s1, %s374
        %p376 = pneg %p76
        %p377 = pneg %p73
        %p378 = pneg %p97
        %p379 = pneg %p94
        %p380 = pneg %p118
        %p381 = pneg %p115
        %p382 = pneg %p139
        %p383 = pneg %p136
        %p384 = pneg %p160
        %p385 = pneg %p157
        %p386 = pneg %p181
        %p387 = pneg %p178
        %p388 = pneg %p202
        %p389 = pneg %p199
        %p390 = pneg %p223
        %p391 = pneg %p220
        %p392 = pneg %p244
        %p393 = pneg %p241
        %p394 = pneg %p270
        %p395 = pneg %p267
        %s396 = sand.u32 %s257, 1
        %s397 = scalar_lea.sflag [#allocation3], %s396
        %s398 = sand.u32 %s257, 1
        %s399 = smul.addr %s398, 8
        %s400 = scalar_lea.vmem [#allocation2], %s399
        %p401 = pneg %p296
        %p402 = pneg %p293
        %s403 = sand.u32 %s283, 1
        %s404 = scalar_lea.sflag [#allocation5], %s403
        %s405 = sand.u32 %s283, 1
        %s406 = smul.addr %s405, 32
        %s407 = scalar_lea.vmem [#allocation4], %s406
        %s408 = smul.u32 2, %s29
        %p409 = scmp.lt.s32.totalorder %s408, 3
        %s410 = scalar_select %p409, %s408, 3
        %s411 = smul.addr %s410, 4
        %s412 = scalar_lea.vmem %s0, %s411
        %s413 = smul.u32 2, %s29
        %s414 = smul.u32 2, %s29
        %p415 = scmp.lt.s32.totalorder %s414, 3
        %s416 = scalar_select %p415, %s414, 3
        %s417 = smul.addr %s416, 8
        %s418 = scalar_lea.vmem %s1, %s417
        %s419 = smul.u32 2, %s29
        %s420 = smul.u32 2, %s29
        %s421 = smul.u32 2, %s29
        %v423 = vld [vmem:[%s412] sm:$0xf]
        %v424 = vld [vmem:[%s412 + $0x4] sm:$0xf]
        %v425 = vld [vmem:[%s2] sm:$0xf]
        %v426 = vld [vmem:[%s2 + $0x4] sm:$0xf]
        %v427 = vld [vmem:[%s3] sm:$0x1]
        %v429 = vlaneseq
        %v430 = vshrl.u32 %v429, 7
        %v431 = vsub.s32 0, %v430
        %v432 = vrot.slane %v427, %v431
        %v436 = vunpack.c.l.b16 %v423
        %v437 = vunpack.c.l.b16 %v424
        %v438 = vpack.c.b16 %v437, %v436
        %v441 = vunpack.c.l.b16 %v425
        %v442 = vunpack.c.l.b16 %v426
        %v443 = vpack.c.b16 %v442, %v441
        %vm445 = vcmask 130048
        %v447 = vsel %vm445, %v438, 0
        %449 = vmatprep.subr.bf16.mxu0 0
        %450 = vmatpush1.bf16.msra.mxu0 %v443
        %451 = vmatprep.subr.bf16.mxu0 0
        %452 = vmatpush1.bf16.msra.mxu0 0
        %453 = vmatprep.subr.bf16.mxu0 0
        %454 = vmatpush1.bf16.msra.mxu0 0
        %455 = vmatprep.subr.bf16.mxu0 0
        %456 = vmatpush1.bf16.msra.mxu0 0
        %457 = vmatprep.subr.bf16.mxu0 0
        %458 = vmatpush1.bf16.msra.mxu0 0
        %459 = vmatprep.subr.bf16.mxu0 0
        %460 = vmatpush1.bf16.msra.mxu0 0
        %461 = vmatprep.subr.bf16.mxu0 0
        %462 = vmatpush1.bf16.msra.mxu0 0
        %463 = vmatprep.subr.bf16.mxu0 0
        %464 = vmatpush1.bf16.msra.mxu0 0
        %465 = vmatprep.subr.bf16.mxu0 0
        %466 = vmatpush1.bf16.msra.mxu0 0
        %467 = vmatprep.subr.bf16.mxu0 0
        %468 = vmatpush1.bf16.msra.mxu0 0
        %469 = vmatprep.subr.bf16.mxu0 0
        %470 = vmatpush1.bf16.msra.mxu0 0
        %471 = vmatprep.subr.bf16.mxu0 0
        %472 = vmatpush1.bf16.msra.mxu0 0
        %473 = vmatprep.subr.bf16.mxu0 0
        %474 = vmatpush1.bf16.msra.mxu0 0
        %475 = vmatprep.subr.bf16.mxu0 0
        %476 = vmatpush1.bf16.msra.mxu0 0
        %477 = vmatprep.subr.bf16.mxu0 0
        %478 = vmatpush1.bf16.msra.mxu0 0
        %479 = vmatprep.subr.bf16.mxu0 0
        %480 = vmatpush1.bf16.msra.mxu0 0
        %481 = vmatprep.mubr.bf16.mxu0 0
        %482 = vmatmul.mubr.bf16.gmra.mrb[0].mxu0 %v447
        %v483 = vpop.f32.mrb[0].mxu0
        %v484 = vadd.f32 %v432, %v483
        %v485 = vpop.f32.mrb[0].mxu0
        %v486 = vpop.f32.mrb[0].mxu0
        %v487 = vadd.f32 %v432, %v486
        %v488 = vpop.f32.mrb[0].mxu0
        %489 = vdwg.mxu0
        %v490 = vmax.f32 %v484, 0.0
        %v491 = vmax.f32 %v487, 0.0
        %v492 = vpack.c.bf16 %v491, %v490
        %v493 = vld [vmem:[%s4] sm:$0xff]
        %v494 = vld [vmem:[%s4 + $0x8] sm:$0xff]
        %v495 = vld [vmem:[%s4 + $0x10] sm:$0xff]
        %v496 = vld [vmem:[%s4 + $0x18] sm:$0xff]
        %v497 = vld [vmem:[%s5] sm:$0x3]
        %v499 = vlaneseq
        %v500 = vshrl.u32 %v499, 7
        %v501 = vsub.s32 0, %v500
        %v502 = vrot.slane %v497, %v501
        %v503 = vlaneseq
        %v504 = vshrl.u32 %v503, 7
        %v505 = vsub.s32 1, %v504
        %v506 = vrot.slane %v497, %v505
        %v513 = vunpack.c.l.b16 %v493
        %v514 = vunpack.c.h.b16 %v493
        %v515 = vunpack.c.l.b16 %v494
        %v516 = vunpack.c.h.b16 %v494
        %v517 = vunpack.c.l.b16 %v495
        %v518 = vunpack.c.h.b16 %v495
        %v519 = vunpack.c.l.b16 %v496
        %v520 = vunpack.c.h.b16 %v496
        %v521 = vpack.c.b16 %v515, %v513
        %v522 = vpack.c.b16 %v516, %v514
        %v523 = vpack.c.b16 %v519, %v517
        %v524 = vpack.c.b16 %v520, %v518
        %vm529 = vcmask 261120
        %v531 = vsel %vm529, %v492, 0
        %533 = vmatprep.subr.bf16.mxu0 %v522
        %534 = vmatpush1.bf16.msra.mxu0 %v521
        %535 = vmatprep.subr.bf16.mxu0 %v524
        %536 = vmatpush1.bf16.msra.mxu0 %v523
        %537 = vmatprep.subr.bf16.mxu0 0
        %538 = vmatpush1.bf16.msra.mxu0 0
        %539 = vmatprep.subr.bf16.mxu0 0
        %540 = vmatpush1.bf16.msra.mxu0 0
        %541 = vmatprep.subr.bf16.mxu0 0
        %542 = vmatpush1.bf16.msra.mxu0 0
        %543 = vmatprep.subr.bf16.mxu0 0
        %544 = vmatpush1.bf16.msra.mxu0 0
        %545 = vmatprep.subr.bf16.mxu0 0
        %546 = vmatpush1.bf16.msra.mxu0 0
        %547 = vmatprep.subr.bf16.mxu0 0
        %548 = vmatpush1.bf16.msra.mxu0 0
        %549 = vmatprep.subr.bf16.mxu0 0
        %550 = vmatpush1.bf16.msra.mxu0 0
        %551 = vmatprep.subr.bf16.mxu0 0
        %552 = vmatpush1.bf16.msra.mxu0 0
        %553 = vmatprep.subr.bf16.mxu0 0
        %554 = vmatpush1.bf16.msra.mxu0 0
        %555 = vmatprep.subr.bf16.mxu0 0
        %556 = vmatpush1.bf16.msra.mxu0 0
        %557 = vmatprep.subr.bf16.mxu0 0
        %558 = vmatpush1.bf16.msra.mxu0 0
        %559 = vmatprep.subr.bf16.mxu0 0
        %560 = vmatpush1.bf16.msra.mxu0 0
        %561 = vmatprep.subr.bf16.mxu0 0
        %562 = vmatpush1.bf16.msra.mxu0 0
        %563 = vmatprep.subr.bf16.mxu0 0
        %564 = vmatpush1.bf16.msra.mxu0 0
        %565 = vmatprep.mubr.bf16.mxu0 0
        %566 = vmatmul.mubr.bf16.gmra.mrb[0].mxu0 %v531
        %v567 = vpop.f32.mrb[0].mxu0
        %v568 = vadd.f32 %v502, %v567
        %v569 = vpop.f32.mrb[0].mxu0
        %v570 = vadd.f32 %v506, %v569
        %v571 = vpop.f32.mrb[0].mxu0
        %v572 = vadd.f32 %v502, %v571
        %v573 = vpop.f32.mrb[0].mxu0
        %v574 = vadd.f32 %v506, %v573
        %575 = vdwg.mxu0
        %v576 = vld [vmem:[%s418] sm:$0xff]
        %v577 = vld [vmem:[%s418 + $0x8] sm:$0xff]
        %v578 = vmul.f32 %v570, 0.5
        %v579 = vmul.f32 %v574, 0.5
        %v580 = vmul.f32 %v578, 1.442695
        %v581 = vpow.pop %v580
        %v582 = vmul.f32 %v579, 1.442695
        %v583 = vpow.pop %v582
        %v584 = vmul.f32 %v576, %v581
        %v585 = vmul.f32 %v577, %v583
        %v586 = vadd.f32 %v568, %v584
        %v587 = vadd.f32 %v572, %v585
        %v588 = vpack.c.bf16 %v587, %v586
        %v589 = vld [vmem:[%s6] sm:$0xf]
        %v590 = vld [vmem:[%s6 + $0x4] sm:$0xf]
        %v591 = vld [vmem:[%s6 + $0x8] sm:$0xf]
        %v592 = vld [vmem:[%s6 + $0xc] sm:$0xf]
        %v593 = vld [vmem:[%s6 + $0x10] sm:$0xf]
        %v594 = vld [vmem:[%s6 + $0x14] sm:$0xf]
        %v595 = vld [vmem:[%s6 + $0x18] sm:$0xf]
        %v596 = vld [vmem:[%s6 + $0x1c] sm:$0xf]
        %v597 = vld [vmem:[%s6 + $0x20] sm:$0xf]
        %v598 = vld [vmem:[%s6 + $0x24] sm:$0xf]
        %v599 = vld [vmem:[%s6 + $0x28] sm:$0xf]
        %v600 = vld [vmem:[%s6 + $0x2c] sm:$0xf]
        %v601 = vld [vmem:[%s6 + $0x30] sm:$0xf]
        %v602 = vld [vmem:[%s6 + $0x34] sm:$0xf]
        %v603 = vld [vmem:[%s6 + $0x38] sm:$0xf]
        %v604 = vld [vmem:[%s6 + $0x3c] sm:$0xf]
        %v605 = vld [vmem:[%s7] sm:$0x1]
        %v607 = vlaneseq
        %v608 = vshrl.u32 %v607, 7
        %v609 = vsub.s32 0, %v608
        %v610 = vrot.slane %v605, %v609
        %v628 = vunpack.c.l.b16 %v589
        %v629 = vunpack.c.l.b16 %v590
        %v630 = vunpack.c.l.b16 %v591
        %v631 = vunpack.c.l.b16 %v592
        %v632 = vunpack.c.l.b16 %v593
        %v633 = vunpack.c.l.b16 %v594
        %v634 = vunpack.c.l.b16 %v595
        %v635 = vunpack.c.l.b16 %v596
        %v636 = vunpack.c.l.b16 %v597
        %v637 = vunpack.c.l.b16 %v598
        %v638 = vunpack.c.l.b16 %v599
        %v639 = vunpack.c.l.b16 %v600
        %v640 = vunpack.c.l.b16 %v601
        %v641 = vunpack.c.l.b16 %v602
        %v642 = vunpack.c.l.b16 %v603
        %v643 = vunpack.c.l.b16 %v604
        %v644 = vpack.c.b16 %v629, %v628
        %v645 = vpack.c.b16 %v631, %v630
        %v646 = vpack.c.b16 %v633, %v632
        %v647 = vpack.c.b16 %v635, %v634
        %v648 = vpack.c.b16 %v637, %v636
        %v649 = vpack.c.b16 %v639, %v638
        %v650 = vpack.c.b16 %v641, %v640
        %v651 = vpack.c.b16 %v643, %v642
        %660 = vmatprep.subr.bf16.mxu0 0
        %661 = vmatpush1.bf16.msra.mxu0 %v644
        %662 = vmatprep.subr.bf16.mxu0 0
        %663 = vmatpush1.bf16.msra.mxu0 %v645
        %664 = vmatprep.subr.bf16.mxu0 0
        %665 = vmatpush1.bf16.msra.mxu0 %v646
        %666 = vmatprep.subr.bf16.mxu0 0
        %667 = vmatpush1.bf16.msra.mxu0 %v647
        %668 = vmatprep.subr.bf16.mxu0 0
        %669 = vmatpush1.bf16.msra.mxu0 %v648
        %670 = vmatprep.subr.bf16.mxu0 0
        %671 = vmatpush1.bf16.msra.mxu0 %v649
        %672 = vmatprep.subr.bf16.mxu0 0
        %673 = vmatpush1.bf16.msra.mxu0 %v650
        %674 = vmatprep.subr.bf16.mxu0 0
        %675 = vmatpush1.bf16.msra.mxu0 %v651
        %676 = vmatprep.subr.bf16.mxu0 0
        %677 = vmatpush1.bf16.msra.mxu0 0
        %678 = vmatprep.subr.bf16.mxu0 0
        %679 = vmatpush1.bf16.msra.mxu0 0
        %680 = vmatprep.subr.bf16.mxu0 0
        %681 = vmatpush1.bf16.msra.mxu0 0
        %682 = vmatprep.subr.bf16.mxu0 0
        %683 = vmatpush1.bf16.msra.mxu0 0
        %684 = vmatprep.subr.bf16.mxu0 0
        %685 = vmatpush1.bf16.msra.mxu0 0
        %686 = vmatprep.subr.bf16.mxu0 0
        %687 = vmatpush1.bf16.msra.mxu0 0
        %688 = vmatprep.subr.bf16.mxu0 0
        %689 = vmatpush1.bf16.msra.mxu0 0
        %690 = vmatprep.subr.bf16.mxu0 0
        %691 = vmatpush1.bf16.msra.mxu0 0
        %692 = vmatprep.mubr.bf16.mxu0 0
        %693 = vmatmul.mubr.bf16.gmra.mrb[0].mxu0 %v588
        %v694 = vpop.f32.mrb[0].mxu0
        %v695 = vadd.f32 %v610, %v694
        %v696 = vpop.f32.mrb[0].mxu0
        %v697 = vpop.f32.mrb[0].mxu0
        %v698 = vadd.f32 %v610, %v697
        %v699 = vpop.f32.mrb[0].mxu0
        %700 = vdwg.mxu0
        %v701 = vmax.f32 %v695, 0.0
        %v702 = vmax.f32 %v698, 0.0
        %v703 = vpack.c.bf16 %v702, %v701
        %v704 = vld [vmem:[%s8] sm:$0xf]
        %v705 = vld [vmem:[%s8 + $0x4] sm:$0xf]
        %v706 = vld [vmem:[%s8 + $0x8] sm:$0xf]
        %v707 = vld [vmem:[%s8 + $0xc] sm:$0xf]
        %v708 = vld [vmem:[%s9] sm:$0x1]
        %v710 = vlaneseq
        %v711 = vshrl.u32 %v710, 7
        %v712 = vsub.s32 0, %v711
        %v713 = vrot.slane %v708, %v712
        %v719 = vunpack.c.l.b16 %v704
        %v720 = vunpack.c.l.b16 %v705
        %v721 = vunpack.c.l.b16 %v706
        %v722 = vunpack.c.l.b16 %v707
        %v723 = vpack.c.b16 %v720, %v719
        %v724 = vpack.c.b16 %v722, %v721
        %v728 = vsel %vm529, %v703, 0
        %730 = vmatprep.subr.bf16.mxu0 0
        %731 = vmatpush1.bf16.msra.mxu0 %v723
        %732 = vmatprep.subr.bf16.mxu0 0
        %733 = vmatpush1.bf16.msra.mxu0 %v724
        %734 = vmatprep.subr.bf16.mxu0 0
        %735 = vmatpush1.bf16.msra.mxu0 0
        %736 = vmatprep.subr.bf16.mxu0 0
        %737 = vmatpush1.bf16.msra.mxu0 0
        %738 = vmatprep.subr.bf16.mxu0 0
        %739 = vmatpush1.bf16.msra.mxu0 0
        %740 = vmatprep.subr.bf16.mxu0 0
        %741 = vmatpush1.bf16.msra.mxu0 0
        %742 = vmatprep.subr.bf16.mxu0 0
        %743 = vmatpush1.bf16.msra.mxu0 0
        %744 = vmatprep.subr.bf16.mxu0 0
        %745 = vmatpush1.bf16.msra.mxu0 0
        %746 = vmatprep.subr.bf16.mxu0 0
        %747 = vmatpush1.bf16.msra.mxu0 0
        %748 = vmatprep.subr.bf16.mxu0 0
        %749 = vmatpush1.bf16.msra.mxu0 0
        %750 = vmatprep.subr.bf16.mxu0 0
        %751 = vmatpush1.bf16.msra.mxu0 0
        %752 = vmatprep.subr.bf16.mxu0 0
        %753 = vmatpush1.bf16.msra.mxu0 0
        %754 = vmatprep.subr.bf16.mxu0 0
        %755 = vmatpush1.bf16.msra.mxu0 0
        %756 = vmatprep.subr.bf16.mxu0 0
        %757 = vmatpush1.bf16.msra.mxu0 0
        %758 = vmatprep.subr.bf16.mxu0 0
        %759 = vmatpush1.bf16.msra.mxu0 0
        %760 = vmatprep.subr.bf16.mxu0 0
        %761 = vmatpush1.bf16.msra.mxu0 0
        %762 = vmatprep.mubr.bf16.mxu0 0
        %763 = vmatmul.mubr.bf16.gmra.mrb[0].mxu0 %v728
        %v764 = vpop.f32.mrb[0].mxu0
        %v765 = vadd.f32 %v713, %v764
        %v766 = vpop.f32.mrb[0].mxu0
        %v767 = vpop.f32.mrb[0].mxu0
        %v768 = vadd.f32 %v713, %v767
        %v769 = vpop.f32.mrb[0].mxu0
        %770 = vdwg.mxu0
        %v771 = vtanh.pop %v765
        %v772 = vtanh.pop %v768
        %v773 = vpack.c.bf16 %v772, %v771
        %v775 = vunpack.c.l.b16 %v773
        %v776 = vunpack.c.h.b16 %v773
        %v777 = vpack.c.b16 %v775, %v775
        %v778 = vpack.c.b16 %v776, %v776
        %781 = vst [vmem:[%s400] sm:$0xf] %v777
        %782 = vst [vmem:[%s400 + $0x4] sm:$0xf] %v778
        %783 = vst [vmem:[%s407] sm:$0xff] %v568
        %784 = vst [vmem:[%s407 + $0x8] sm:$0xff] %v570
        %785 = vst [vmem:[%s407 + $0x10] sm:$0xff] %v572
        %786 = vst [vmem:[%s407 + $0x18] sm:$0xff] %v574
        %s787 = sand.u32 %s257, 1
        %s788 = scalar_lea.sflag [#allocation3], %s787
        %s789 = sand.u32 %s257, 1
        %s790 = smul.addr %s789, 8
        %s791 = scalar_lea.vmem [#allocation2], %s790
        %s792 = sand.u32 %s283, 1
        %s793 = scalar_lea.sflag [#allocation5], %s792
        %s794 = sand.u32 %s283, 1
        %s795 = smul.addr %s794, 32
        %s796 = scalar_lea.vmem [#allocation4], %s795
        // Predicated region
        $region61: #{tpu_custom_call.1} parent=59 // pred_check
          %p797 = pneg %p267
        $region62: #{tpu_custom_call.1} parent=59 // pred_check_branch
          %799 = sbr.rel (%p797) target = $region64
        $region63: #{tpu_custom_call.1} parent=59 // pred_region
          %s800 = smul.u32 2, %s29
          %s802 = ssub.s32 128, 128
          %803 = vsyncadd %s788, %s802
          %s804 = smul.addr %s800, 64
          %s805 = scalar_lea.hbm %s10, %s804
          %s806 = sshll.u32 %s791, 4
          %s807 = int_to_ptr.vmem [resolvable:$true] %s806
          %812 = dma.vmem_to_hbm [thread:$0]  %s807, 128, %s805, %s788, 64, 64, 4
        $region64: #{tpu_custom_call.1} parent=59 // pred_fallthru
          _
        // Predicated region
        $region65: #{tpu_custom_call.1} parent=59 // pred_check
          %p813 = pneg %p293
        $region66: #{tpu_custom_call.1} parent=59 // pred_check_branch
          %815 = sbr.rel (%p813) target = $region68
        $region67: #{tpu_custom_call.1} parent=59 // pred_region
          %s816 = smul.u32 2, %s29
          %s818 = ssub.s32 512, 512
          %819 = vsyncadd %s793, %s818
          %s820 = smul.addr %s816, 2
          %s821 = smul.addr %s820, 128
          %s822 = scalar_lea.hbm %s11, %s821
          %s823 = sshll.u32 %s796, 4
          %s824 = int_to_ptr.vmem [resolvable:$true] %s823
          %829 = dma.vmem_to_hbm [thread:$0]  %s824, 512, %s822, %s793, 256, 256, 16
        $region68: #{tpu_custom_call.1} parent=59 // pred_fallthru
          _
      $region60: #{tpu_custom_call.1} parent=5 // pred_fallthru
        _
      %p830 = scmp.le.s32.totalorder 2, %s24
      // Predicated region
      $region69: #{tpu_custom_call.1} parent=5 // pred_check
        %p831 = pneg %p830
      $region70: #{tpu_custom_call.1} parent=5 // pred_check_branch
        %833 = sbr.rel (%p831) target = $region72
      $region71: #{tpu_custom_call.1} parent=5 // pred_region
        %s834 = ssub.s32 %s24, 2
        // Predicated region
        $region73: #{tpu_custom_call.1} parent=71 // pred_check
          %p835 = pneg %p273
        $region74: #{tpu_custom_call.1} parent=71 // pred_check_branch
          %837 = sbr.rel (%p835) target = $region76
        $region75: #{tpu_custom_call.1} parent=71 // pred_region
          %s838 = sand.u32 %s258, 1
          %s839 = scalar_lea.sflag [#allocation3], %s838
          %s840 = sand.u32 %s258, 1
          %s841 = smul.addr %s840, 8
          %s842 = scalar_lea.vmem [#allocation2], %s841
          %843 = dma.done %s839, 128
        $region76: #{tpu_custom_call.1} parent=71 // pred_fallthru
          _
        // Predicated region
        $region77: #{tpu_custom_call.1} parent=71 // pred_check
          %p844 = pneg %p299
        $region78: #{tpu_custom_call.1} parent=71 // pred_check_branch
          %846 = sbr.rel (%p844) target = $region80
        $region79: #{tpu_custom_call.1} parent=71 // pred_region
          %s847 = sand.u32 %s284, 1
          %s848 = scalar_lea.sflag [#allocation5], %s847
          %s849 = sand.u32 %s284, 1
          %s850 = smul.addr %s849, 32
          %s851 = scalar_lea.vmem [#allocation4], %s850
          %852 = dma.done %s848, 512
        $region80: #{tpu_custom_call.1} parent=71 // pred_fallthru
          _
      $region72: #{tpu_custom_call.1} parent=5 // pred_fallthru
        _
    $region6: #{tpu_custom_call.1} parent=1 // loop_footer
      %s28 = sadd.s32 1, %s24
    $region7: #{tpu_custom_call.1} parent=1 // loop_footer_branch
      %23 = sbr.rel target = $region3
    $region8: #{tpu_custom_call.1} parent=1 // loop_exit
      _
    %853 = vsyncpa [#allocation3], 1
    %s854 = scalar_lea.sflag [#allocation3], 1
    %855 = vsyncpa %s854, 1
    %856 = vsyncpa [#allocation5], 1
    %s857 = scalar_lea.sflag [#allocation5], 1
    %858 = vsyncpa %s857, 1

</llo_original>
